<compile_context>
chip_gen: v5e
topology: v5e:2x2
jax: 0.10.0
libtpu: 0.0.40
codegen_flags: <defaults>
</compile_context>

<pallas_src>
import jax
import jax.numpy as jnp
from jax import lax
from jax.experimental import pallas as pl
from jax.experimental.pallas import tpu as pltpu

_LANE = 128                      # lane granularity (last dim)
_MAX_TILE = 1024                 # max tile edge: 1024^2 f32 block = 4 MiB
_VMEM_LIMIT = 32 * 1024 * 1024   # worst case (branch 2): 2 mats x 2 bufs x 4 MiB


def _round_up(x, m):
    return (x + m - 1) // m * m


def _choose_tile(dim):
    """Tile edge: multiple of 128, <= _MAX_TILE, minimizing zero-padding."""
    dim_pad = _round_up(dim, _LANE)
    if dim_pad <= _MAX_TILE:
        return dim_pad                       # single tile, no extra padding
    # Largest tile (multiple of 128, >= 384) that divides the 128-padded dim
    # exactly -> zero padded bytes streamed.
    for t in range(_MAX_TILE, _LANE - 1, -_LANE):
        if t >= 3 * _LANE and dim_pad % t == 0:
            return t
    return 512                               # fallback: < 512 elems of padding


def _pad2d(x, rows, cols):
    r, c = x.shape
    if r == rows and c == cols:
        return x
    return jnp.pad(x, ((0, rows - r), (0, cols - c)))


def _pad_row(v, cols):
    (n,) = v.shape
    row = v.reshape(1, n)
    if n == cols:
        return row
    return jnp.pad(row, ((0, 0), (0, cols - n)))


def _f32(x):
    return x if x.dtype == jnp.float32 else x.astype(jnp.float32)


# ---------------------------------------------------------------------------
# Branch 1: p = W.T @ r   (r: (R,)), computed as (1, R) @ (R, O) -> (1, O).
# grid = (O tiles [parallel], R tiles [arbitrary contraction]).
# ---------------------------------------------------------------------------
def _wt_r_kernel(r_ref, w_ref, o_ref):
    @pl.when(pl.program_id(1) == 0)
    def _():
        o_ref[...] = jnp.zeros_like(o_ref)

    o_ref[...] += jnp.dot(r_ref[...], w_ref[...],
                          preferred_element_type=jnp.float32)


@jax.jit
def _her_forward_no_m(W, r):
    R, O = W.shape
    tk = _choose_tile(R)               # contraction tile
    tn = _choose_tile(O)               # output tile (lane-dense)
    k_pad = _round_up(R, tk)
    n_pad = _round_up(O, tn)

    w_p = _pad2d(_f32(W), k_pad, n_pad)
    r_row = _pad_row(_f32(r), k_pad)

    out = pl.pallas_call(
        _wt_r_kernel,
        out_shape=jax.ShapeDtypeStruct((1, n_pad), jnp.float32),
        grid=(n_pad // tn, k_pad // tk),
        in_specs=[
            pl.BlockSpec((1, tk), lambda j, k: (0, k)),
            pl.BlockSpec((tk, tn), lambda j, k: (k, j)),
        ],
        out_specs=pl.BlockSpec((1, tn), lambda j, k: (0, j)),
        compiler_params=pltpu.CompilerParams(
            dimension_semantics=("parallel", "arbitrary"),
            vmem_limit_bytes=_VMEM_LIMIT,
        ),
    )(r_row, w_p)
    return out[0, :O]


# ---------------------------------------------------------------------------
# Branch 2: p = (W + M) @ r  (r: (O,)), computed as
#   dot_general((1, O), (R, O); contracting dim 1 of both) -> (1, R)
# so the output is a lane-dense row; no (R,1)/(O,1) columns, no transpose.
# grid = (R tiles [parallel], O tiles [arbitrary contraction]).
# ---------------------------------------------------------------------------
def _wm_r_kernel(r_ref, w_ref, m_ref, o_ref):
    @pl.when(pl.program_id(1) == 0)
    def _():
        o_ref[...] = jnp.zeros_like(o_ref)

    wm = w_ref[...] + m_ref[...]       # VPU add: free filler under the DMA stream
    o_ref[...] += lax.dot_general(
        r_ref[...], wm,
        dimension_numbers=(((1,), (1,)), ((), ())),
        preferred_element_type=jnp.float32)


@jax.jit
def _her_forward_with_m(W, M, r):
    R, O = W.shape
    tr = _choose_tile(R)               # output tile (lane-dense)
    tk = _choose_tile(O)               # contraction tile
    r_pad = _round_up(R, tr)
    o_pad = _round_up(O, tk)

    w_p = _pad2d(_f32(W), r_pad, o_pad)
    m_p = _pad2d(_f32(M), r_pad, o_pad)
    r_row = _pad_row(_f32(r), o_pad)

    out = pl.pallas_call(
        _wm_r_kernel,
        out_shape=jax.ShapeDtypeStruct((1, r_pad), jnp.float32),
        grid=(r_pad // tr, o_pad // tk),
        in_specs=[
            pl.BlockSpec((1, tk), lambda i, k: (0, k)),
            pl.BlockSpec((tr, tk), lambda i, k: (i, k)),
            pl.BlockSpec((tr, tk), lambda i, k: (i, k)),
        ],
        out_specs=pl.BlockSpec((1, tr), lambda i, k: (0, i)),
        compiler_params=pltpu.CompilerParams(
            dimension_semantics=("parallel", "arbitrary"),
            vmem_limit_bytes=_VMEM_LIMIT,
        ),
    )(r_row, w_p, m_p)
    return out[0, :R]


def her_forward(W, r, m_from_above=None):
    """Pallas implementation of HERLayer.forward."""
    if m_from_above is None:
        return _her_forward_no_m(W, r)
    return _her_forward_with_m(W, m_from_above, r)


class HERLayerPallas:
    """Synthetic HERLayer with deterministically initialized weights."""

    def __init__(self, n_representations, n_outcomes, alpha=0.075, key=None):
        if key is None:
            key = jax.random.PRNGKey(0)
        # torch.randn(n_representations, n_outcomes) equivalent
        self.W = jax.random.normal(key, (n_representations, n_outcomes),
                                   dtype=jnp.float32)
        self.alpha = alpha

    def forward(self, r, m_from_above=None):
        return her_forward(self.W, r, m_from_above)

    def update_weights(self, e, r):
        # Plain-JAX glue (not the hot path of the forward kernels).
        self.W = self.W + self.alpha * jnp.outer(e, r)


def _check(n_representations, n_outcomes, key, atol, rtol):
    k_w, k_r1, k_r2, k_m = jax.random.split(key, 4)
    layer = HERLayerPallas(n_representations, n_outcomes, key=k_w)

    # Branch 1: no m_from_above  ->  p = W.T @ r, r of size n_representations
    r1 = jax.random.normal(k_r1, (n_representations,), dtype=jnp.float32)
    p1 = jax.block_until_ready(layer.forward(r1))
    ref1 = layer.W.T @ r1
    assert p1.shape == (n_outcomes,)
    assert jnp.allclose(p1, ref1, atol=atol, rtol=rtol), \
        float(jnp.max(jnp.abs(p1 - ref1)))

    # Branch 2: with m_from_above -> p = (W + M) @ r, r of size n_outcomes
    r2 = jax.random.normal(k_r2, (n_outcomes,), dtype=jnp.float32)
    M = jax.random.normal(k_m, (n_representations, n_outcomes),
                          dtype=jnp.float32)
    p2 = jax.block_until_ready(layer.forward(r2, m_from_above=M))
    ref2 = (layer.W + M) @ r2
    assert p2.shape == (n_representations,)
    assert jnp.allclose(p2, ref2, atol=atol, rtol=rtol), \
        float(jnp.max(jnp.abs(p2 - ref2)))


if __name__ == "__main__":
    root = jax.random.PRNGKey(0)
    k_small, k_big = jax.random.split(root)

    # Small config (original demo sizes): single-tile grid + zero-padding path.
    _check(32, 16, k_small, atol=1e-5, rtol=1e-5)

    # Larger config: full-dim single tiles (no padding beyond lane alignment)
    # with the resident VMEM accumulator and lane-dense output rows.
    _check(640, 384, k_big, atol=1e-4, rtol=1e-3)

    print("KERNEL_OK")
</pallas_src>

<mosaic_0001>
module attributes {stable_mosaic.version = 11 : i64} {
  func.func @_wt_r_kernel(%arg0: i32, %arg1: i32, %arg2: memref<1x128xf32, #tpu.memory_space<vmem>>, %arg3: memref<128x128xf32, #tpu.memory_space<vmem>>, %arg4: memref<1x128xf32, #tpu.memory_space<vmem>>) attributes {dimension_semantics = [#tpu.dimension_semantics<parallel>, #tpu.dimension_semantics<arbitrary>], iteration_bounds = array<i64: 1, 1>, scalar_prefetch = 0 : i64, scratch_operands = 0 : i64, tpu.core_type = #tpu.core_type<tc>, window_params = [{transform_indices = @transform_0, window_bounds = array<i64: 1, 128>}, {transform_indices = @transform_1, window_bounds = array<i64: 128, 128>}, {transform_indices = @transform_2, window_bounds = array<i64: 1, 128>}]} {
    %c0_i32 = arith.constant 0 : i32
    %0 = arith.cmpi eq, %arg1, %c0_i32 : i32
    %1 = arith.extui %0 : i1 to i32
    %c0_i32_0 = arith.constant 0 : i32
    %2 = arith.cmpi ne, %1, %c0_i32_0 : i32
    scf.if %2 {
      %cst_8 = arith.constant 0.000000e+00 : f32
      %9 = vector.broadcast %cst_8 : f32 to vector<1x128xf32>
      %c0_9 = arith.constant 0 : index
      %c0_10 = arith.constant 0 : index
      %10 = vector.load %arg4[%c0_9, %c0_10] : memref<1x128xf32, #tpu.memory_space<vmem>>, vector<1x128xf32>
      tpu.vector_store %arg4[%c0_9, %c0_10], %9 {strides = array<i32>} : memref<1x128xf32, #tpu.memory_space<vmem>>, vector<1x128xf32>,
    } else {
    }
    %c0 = arith.constant 0 : index
    %c0_1 = arith.constant 0 : index
    %3 = vector.load %arg4[%c0, %c0_1] : memref<1x128xf32, #tpu.memory_space<vmem>>, vector<1x128xf32>
    %c0_2 = arith.constant 0 : index
    %c0_3 = arith.constant 0 : index
    %4 = vector.load %arg2[%c0_2, %c0_3] : memref<1x128xf32, #tpu.memory_space<vmem>>, vector<1x128xf32>
    %c0_4 = arith.constant 0 : index
    %c0_5 = arith.constant 0 : index
    %5 = vector.load %arg3[%c0_4, %c0_5] : memref<128x128xf32, #tpu.memory_space<vmem>>, vector<128x128xf32>
    %cst = arith.constant dense<0.000000e+00> : vector<1x128xf32>
    %6 = tpu.matmul %4, %5, %cst {dimension_numbers = #tpu.dot_dimension_numbers<[1], [0], [0], [1], [0, 0, 1, 1], [], []>} : vector<1x128xf32>, vector<128x128xf32>, vector<1x128xf32> -> vector<1x128xf32>
    %7 = arith.addf %3, %6 : vector<1x128xf32>
    %c0_6 = arith.constant 0 : index
    %c0_7 = arith.constant 0 : index
    %8 = vector.load %arg4[%c0_6, %c0_7] : memref<1x128xf32, #tpu.memory_space<vmem>>, vector<1x128xf32>
    tpu.vector_store %arg4[%c0_6, %c0_7], %7 {strides = array<i32>} : memref<1x128xf32, #tpu.memory_space<vmem>>, vector<1x128xf32>,
    return
  }
  func.func @transform_0(%arg0: i32, %arg1: i32) -> (i32, i32) {
    %c0_i32 = arith.constant 0 : i32
    %c0_i32_0 = arith.constant 0 : i32
    return %c0_i32, %arg1 : i32, i32
  }
  func.func @transform_1(%arg0: i32, %arg1: i32) -> (i32, i32) {
    %c0_i32 = arith.constant 0 : i32
    return %arg1, %arg0 : i32, i32
  }
  func.func @transform_2(%arg0: i32, %arg1: i32) -> (i32, i32) {
    %c0_i32 = arith.constant 0 : i32
    %c0_i32_0 = arith.constant 0 : i32
    return %c0_i32, %arg0 : i32, i32
  }
}

</mosaic_0001>

<llo_original>
// kernel: _her_forward_no_m.1
$region0: #{_her_forward_no_m.1}
  #allocation0 [shape = 'u32[]', space=smem, size = 0x4, offset = 0x4, fixed_abs, tag = 'smem constant byte address 0x4 - core index']
  #allocation1 [shape = 'u32[72,128]{1,0:T(1,128)}', space=vmem, size = 0x9000, scoped, tag = 'internal scratch']
  %s0 = inlined_call_operand.vmem [shape: f32[1,128], index: 0, kind: input, shape index: {}]
  %s1 = inlined_call_operand.vmem [shape: f32[128,128], index: 1, kind: input, shape index: {}]
  %s2 = inlined_call_operand.vmem [shape: f32[1,128], index: 2, kind: output, shape index: {}]
  %s3 = sld [smem:[#allocation0]]
  $region22: #{_her_forward_no_m.1} parent=0
    _
  %s5 = ssub.s32 1, %s3
  %s6 = scalar_select 0, %s5, %s3
  // Predicated region
  $region2: #{_her_forward_no_m.1} parent=0 // pred_check
    _
  $region3: #{_her_forward_no_m.1} parent=0 // pred_check_branch
    %8 = sbr.rel (0) target = $region5
  $region4: #{_her_forward_no_m.1} parent=0 // pred_region
    _
  $region5: #{_her_forward_no_m.1} parent=0 // pred_fallthru
    _
  // Predicated region
  $region6: #{_her_forward_no_m.1} parent=0 // pred_check
    _
  $region7: #{_her_forward_no_m.1} parent=0 // pred_check_branch
    %10 = sbr.rel (0) target = $region9
  $region8: #{_her_forward_no_m.1} parent=0 // pred_region
    _
  $region9: #{_her_forward_no_m.1} parent=0 // pred_fallthru
    _
  %p11 = scmp.eq.s32.totalorder 0, 0
  // Predicated region
  $region10: #{_her_forward_no_m.1} parent=0 // pred_check
    %p12 = pneg %p11
  $region11: #{_her_forward_no_m.1} parent=0 // pred_check_branch
    %14 = sbr.rel (%p12) target = $region13
  $region12: #{_her_forward_no_m.1} parent=0 // pred_region
    %15 = vst [vmem:[%s2] sm:$0x1] 0.0
  $region13: #{_her_forward_no_m.1} parent=0 // pred_fallthru
    _
  %v16 = vld [vmem:[%s2] sm:$0x1]
  %v17 = vld [vmem:[%s0] sm:$0x1]
  %v18 = vld [vmem:[%s1] sm:$0xff]
  %v19 = vld [vmem:[%s1 + $0x8] sm:$0xff]
  %v20 = vld [vmem:[%s1 + $0x10] sm:$0xff]
  %v21 = vld [vmem:[%s1 + $0x18] sm:$0xff]
  %v22 = vld [vmem:[%s1 + $0x20] sm:$0xff]
  %v23 = vld [vmem:[%s1 + $0x28] sm:$0xff]
  %v24 = vld [vmem:[%s1 + $0x30] sm:$0xff]
  %v25 = vld [vmem:[%s1 + $0x38] sm:$0xff]
  %v26 = vld [vmem:[%s1 + $0x40] sm:$0xff]
  %v27 = vld [vmem:[%s1 + $0x48] sm:$0xff]
  %v28 = vld [vmem:[%s1 + $0x50] sm:$0xff]
  %v29 = vld [vmem:[%s1 + $0x58] sm:$0xff]
  %v30 = vld [vmem:[%s1 + $0x60] sm:$0xff]
  %v31 = vld [vmem:[%s1 + $0x68] sm:$0xff]
  %v32 = vld [vmem:[%s1 + $0x70] sm:$0xff]
  %v33 = vld [vmem:[%s1 + $0x78] sm:$0xff]
  %34 = vmatpush.msra.mxu0 %v33
  %35 = vmatpush.msra.mxu0 %v32
  %36 = vmatpush.msra.mxu0 %v31
  %37 = vmatpush.msra.mxu0 %v30
  %38 = vmatpush.msra.mxu0 %v29
  %39 = vmatpush.msra.mxu0 %v28
  %40 = vmatpush.msra.mxu0 %v27
  %41 = vmatpush.msra.mxu0 %v26
  %42 = vmatpush.msra.mxu0 %v25
  %43 = vmatpush.msra.mxu0 %v24
  %44 = vmatpush.msra.mxu0 %v23
  %45 = vmatpush.msra.mxu0 %v22
  %46 = vmatpush.msra.mxu0 %v21
  %47 = vmatpush.msra.mxu0 %v20
  %48 = vmatpush.msra.mxu0 %v19
  %49 = vmatpush.msra.mxu0 %v18
  %50 = vmatmul.f32.gmra.mxu0 %v17
  %v51 = vpop.f32.mrf.mxu0
  %v52 = vadd.f32 0.0, %v51
  %53 = vdwg.mxu0
  %v54 = vadd.f32 %v16, %v52
  %55 = vst [vmem:[%s2] sm:$0x1] %v54
  // Predicated region
  $region14: #{_her_forward_no_m.1} parent=0 // pred_check
    _
  $region15: #{_her_forward_no_m.1} parent=0 // pred_check_branch
    %57 = sbr.rel (0) target = $region17
  $region16: #{_her_forward_no_m.1} parent=0 // pred_region
    _
  $region17: #{_her_forward_no_m.1} parent=0 // pred_fallthru
    _
  // Predicated region
  $region18: #{_her_forward_no_m.1} parent=0 // pred_check
    _
  $region19: #{_her_forward_no_m.1} parent=0 // pred_check_branch
    %59 = sbr.rel (0) target = $region21
  $region20: #{_her_forward_no_m.1} parent=0 // pred_region
    _
  $region21: #{_her_forward_no_m.1} parent=0 // pred_fallthru
    _

</llo_original>
